<compile_context>
chip_gen: v5e
topology: v5e:2x2
jax: 0.10.0
libtpu: 0.0.40
codegen_flags: <defaults>
</compile_context>

<pallas_src>
import jax
import jax.numpy as jnp
from jax.experimental import pallas as pl
from jax.experimental.pallas import tpu as pltpu

_SUBLANE = 16                           # row multiple valid for f32 (8,128) and bf16 (16,128) tiles
_VMEM_TILE_BUDGET = 36 * 1024 * 1024    # target tiles+weights footprint (fits v7x's 64 MiB VMEM)
_VMEM_LIMIT_BYTES = 48 * 1024 * 1024    # explicit scoped-VMEM request (< v7x physical, << v5e/v6e)


def _round_up(a, b):
    return (a + b - 1) // b * b


def _gelu_erf(x):
    # Matches torch.nn.GELU() default (erf-based, not tanh approximation).
    return 0.5 * x * (1.0 + jax.lax.erf(x * (2.0 ** -0.5)))


def _gelu_tanh(x):
    # tanh-approx GELU: transcendental runs on the EUP slot (co-issues with
    # VPU/MXU work).  ~1e-3 relative delta vs the erf form — opt-in only.
    c = 0.7978845608028654  # sqrt(2/pi)
    return 0.5 * x * (1.0 + jnp.tanh(c * (x + 0.044715 * x * x * x)))


def _make_kernel(gelu_approx):
    gelu = _gelu_tanh if gelu_approx else _gelu_erf

    def kernel(x_ref, w1_ref, b1_ref, w2_ref, b2_ref, w3_ref, b3_ref, o_ref):
        f32 = jnp.float32
        act_dtype = x_ref.dtype  # bf16 stays bf16 on the MXU; f32 stays f32.

        # Matmul operands in native dtype, accumulation in f32.
        h = jnp.dot(x_ref[...], w1_ref[...], preferred_element_type=f32)
        h = gelu(h + b1_ref[...].astype(f32)).astype(act_dtype)

        h = jnp.dot(h, w2_ref[...], preferred_element_type=f32)
        h = gelu(h + b2_ref[...].astype(f32)).astype(act_dtype)

        y = jnp.dot(h, w3_ref[...], preferred_element_type=f32)
        o_ref[...] = (y + b3_ref[...].astype(f32)).astype(o_ref.dtype)

    return kernel


def _select_row_tile(tm_req, n_rows, in_f, hid, out_f, act_bytes, weight_bytes):
    """Pick the row tile: pipeline-deep for large N, footprint-capped for VMEM."""
    TARGET_STEPS = 8     # keep >= ~8 grid steps for large N (hide HBM latency)
    MIN_TM = 256         # but never shrink below this just for depth

    tm = max(_SUBLANE, _round_up(int(tm_req), _SUBLANE))
    depth_cap = max(MIN_TM, _round_up((n_rows + TARGET_STEPS - 1) // TARGET_STEPS, _SUBLANE))
    tm = min(tm, depth_cap)
    tm = max(_SUBLANE, min(tm, _round_up(n_rows, _SUBLANE)))

    def footprint(t):
        # 2x double-buffered x tile + 2x double-buffered y tile
        # + single-buffered weights/biases + ~2 f32 hidden tiles of scratch.
        return (2 * t * in_f * act_bytes
                + 2 * t * out_f * act_bytes
                + weight_bytes
                + 2 * t * hid * 4)

    while tm > _SUBLANE and footprint(tm) > _VMEM_TILE_BUDGET:
        tm = max(_SUBLANE, _round_up(tm // 2, _SUBLANE))
    return tm


def feature_projection_mlp(x, params, *, tm=512, gelu_approx=False):
    """x: (N, in_features). params: w1,b1,w2,b2,w3,b3 with w_i pre-transposed (in, out)."""
    N, in_f = x.shape
    w1, b1 = params["w1"], params["b1"]   # (in_f, hid), (1, hid)
    w2, b2 = params["w2"], params["b2"]   # (hid, hid),  (1, hid)
    w3, b3 = params["w3"], params["b3"]   # (hid, out),  (1, out)
    hid = w1.shape[1]
    out_f = w3.shape[1]

    act_bytes = jnp.dtype(x.dtype).itemsize
    weight_bytes = sum(int(a.size) * jnp.dtype(a.dtype).itemsize
                       for a in (w1, b1, w2, b2, w3, b3))
    tm = _select_row_tile(tm, N, in_f, hid, out_f, act_bytes, weight_bytes)

    # Ragged N: no wrapper pad/slice — Pallas masks the partial last block.
    grid = (pl.cdiv(N, tm),)

    row = lambda i: (i, 0)
    full = lambda i: (0, 0)
    resident = pl.Buffered(1)  # constant index_map: one VMEM-resident buffer, no re-DMA

    in_specs = [
        pl.BlockSpec((tm, in_f), row),
        pl.BlockSpec((in_f, hid), full, pipeline_mode=resident),
        pl.BlockSpec((1, hid), full, pipeline_mode=resident),
        pl.BlockSpec((hid, hid), full, pipeline_mode=resident),
        pl.BlockSpec((1, hid), full, pipeline_mode=resident),
        pl.BlockSpec((hid, out_f), full, pipeline_mode=resident),
        pl.BlockSpec((1, out_f), full, pipeline_mode=resident),
    ]

    return pl.pallas_call(
        _make_kernel(gelu_approx),
        out_shape=jax.ShapeDtypeStruct((N, out_f), x.dtype),
        grid_spec=pltpu.PrefetchScalarGridSpec(
            num_scalar_prefetch=0,
            grid=grid,
            in_specs=in_specs,
            out_specs=pl.BlockSpec((tm, out_f), row),
        ),
        compiler_params=pltpu.CompilerParams(
            dimension_semantics=("parallel",),
            vmem_limit_bytes=_VMEM_LIMIT_BYTES,
        ),
    )(x, w1, b1, w2, b2, w3, b3)


def init_params(key, in_features, out_features, dtype=jnp.float32):
    """Deterministic init mirroring the PyTorch module's layer shapes.

    PyTorch nn.Linear stores weight as (out, in); here we store the transpose
    (in, out) so the kernel computes x @ W directly.
    """
    hid = (in_features + out_features) // 2
    ks = jax.random.split(key, 6)

    def linear(kw, kb, fan_in, fan_out):
        bound = 1.0 / jnp.sqrt(fan_in)
        w = jax.random.uniform(kw, (fan_in, fan_out), dtype, -bound, bound)
        b = jax.random.uniform(kb, (1, fan_out), dtype, -bound, bound)
        return w, b

    w1, b1 = linear(ks[0], ks[1], in_features, hid)
    w2, b2 = linear(ks[2], ks[3], hid, hid)
    w3, b3 = linear(ks[4], ks[5], hid, out_features)
    return {"w1": w1, "b1": b1, "w2": w2, "b2": b2, "w3": w3, "b3": b3}


def _reference(x, p):
    h = _gelu_erf(x @ p["w1"] + p["b1"])
    h = _gelu_erf(h @ p["w2"] + p["b2"])
    return h @ p["w3"] + p["b3"]


if __name__ == "__main__":
    key = jax.random.PRNGKey(0)
    k_x, k_p = jax.random.split(key)

    in_features, out_features = 32, 16   # hidden = (32 + 16) // 2 = 24
    N = 200                              # ragged row count: exercises the masked last block

    x = jax.random.normal(k_x, (N, in_features), dtype=jnp.float32)
    params = init_params(k_p, in_features, out_features)

    # jit-compiled call (wrapper logic is shape-static, traces cleanly);
    # tm=64 exercises a multi-step grid + partial last block at demo size.
    fwd = jax.jit(lambda xx, pp: feature_projection_mlp(xx, pp, tm=64))
    y = jax.block_until_ready(fwd(x, params))

    y_ref = _reference(x, params)
    assert y.shape == (N, out_features)
    assert jnp.allclose(y, y_ref, atol=1e-5, rtol=1e-5), "f32 mismatch vs reference"

    # bf16 activations/weights: operands feed the MXU natively (no f32 upcast),
    # accumulation stays f32 — loose-tolerance parity against the f32 reference.
    x16 = x.astype(jnp.bfloat16)
    p16 = jax.tree_util.tree_map(lambda a: a.astype(jnp.bfloat16), params)
    y16 = jax.block_until_ready(feature_projection_mlp(x16, p16, tm=64))
    assert y16.shape == (N, out_features) and y16.dtype == jnp.bfloat16
    assert jnp.allclose(y16.astype(jnp.float32), y_ref, atol=1e-1, rtol=1e-1), "bf16 mismatch"

    print("KERNEL_OK")
</pallas_src>

<mosaic_0001>
module attributes {stable_mosaic.version = 11 : i64} {
  func.func @kernel(%arg0: i32, %arg1: memref<64x32xf32, #tpu.memory_space<vmem>>, %arg2: memref<32x24xf32, #tpu.memory_space<vmem>>, %arg3: memref<1x24xf32, #tpu.memory_space<vmem>>, %arg4: memref<24x24xf32, #tpu.memory_space<vmem>>, %arg5: memref<1x24xf32, #tpu.memory_space<vmem>>, %arg6: memref<24x16xf32, #tpu.memory_space<vmem>>, %arg7: memref<1x16xf32, #tpu.memory_space<vmem>>, %arg8: memref<64x16xf32, #tpu.memory_space<vmem>>) attributes {dimension_semantics = [#tpu.dimension_semantics<parallel>], iteration_bounds = array<i64: 4>, scalar_prefetch = 0 : i64, scratch_operands = 0 : i64, tpu.core_type = #tpu.core_type<tc>, window_params = [{transform_indices = @transform_0, window_bounds = array<i64: 64, 32>}, {pipeline_mode = #tpu.pipeline_mode<synchronous>, transform_indices = @transform_1, window_bounds = array<i64: 32, 24>}, {pipeline_mode = #tpu.pipeline_mode<synchronous>, transform_indices = @transform_2, window_bounds = array<i64: 1, 24>}, {pipeline_mode = #tpu.pipeline_mode<synchronous>, transform_indices = @transform_3, window_bounds = array<i64: 24, 24>}, {pipeline_mode = #tpu.pipeline_mode<synchronous>, transform_indices = @transform_4, window_bounds = array<i64: 1, 24>}, {pipeline_mode = #tpu.pipeline_mode<synchronous>, transform_indices = @transform_5, window_bounds = array<i64: 24, 16>}, {pipeline_mode = #tpu.pipeline_mode<synchronous>, transform_indices = @transform_6, window_bounds = array<i64: 1, 16>}, {transform_indices = @transform_7, window_bounds = array<i64: 64, 16>}]} {
    %c0 = arith.constant 0 : index
    %c0_0 = arith.constant 0 : index
    %0 = vector.load %arg1[%c0, %c0_0] : memref<64x32xf32, #tpu.memory_space<vmem>>, vector<64x32xf32>
    %c0_1 = arith.constant 0 : index
    %c0_2 = arith.constant 0 : index
    %1 = vector.load %arg2[%c0_1, %c0_2] : memref<32x24xf32, #tpu.memory_space<vmem>>, vector<32x24xf32>
    %cst = arith.constant dense<0.000000e+00> : vector<64x24xf32>
    %2 = tpu.matmul %0, %1, %cst {dimension_numbers = #tpu.dot_dimension_numbers<[1], [0], [0], [1], [0, 0, 1, 1], [], []>} : vector<64x32xf32>, vector<32x24xf32>, vector<64x24xf32> -> vector<64x24xf32>
    %c0_3 = arith.constant 0 : index
    %c0_4 = arith.constant 0 : index
    %3 = vector.load %arg3[%c0_3, %c0_4] : memref<1x24xf32, #tpu.memory_space<vmem>>, vector<1x24xf32>
    %4 = vector.broadcast %3 : vector<1x24xf32> to vector<64x24xf32>
    %5 = arith.addf %2, %4 : vector<64x24xf32>
    %cst_5 = arith.constant 5.000000e-01 : f32
    %6 = vector.broadcast %cst_5 : f32 to vector<64x24xf32>
    %7 = arith.mulf %6, %5 : vector<64x24xf32>
    %cst_6 = arith.constant 0.707106769 : f32
    %8 = vector.broadcast %cst_6 : f32 to vector<64x24xf32>
    %9 = arith.mulf %5, %8 : vector<64x24xf32>
    %10 = math.erf %9 : vector<64x24xf32>
    %cst_7 = arith.constant 1.000000e+00 : f32
    %11 = vector.broadcast %cst_7 : f32 to vector<64x24xf32>
    %12 = arith.addf %11, %10 : vector<64x24xf32>
    %13 = arith.mulf %7, %12 : vector<64x24xf32>
    %c0_8 = arith.constant 0 : index
    %c0_9 = arith.constant 0 : index
    %14 = vector.load %arg4[%c0_8, %c0_9] : memref<24x24xf32, #tpu.memory_space<vmem>>, vector<24x24xf32>
    %cst_10 = arith.constant dense<0.000000e+00> : vector<64x24xf32>
    %15 = tpu.matmul %13, %14, %cst_10 {dimension_numbers = #tpu.dot_dimension_numbers<[1], [0], [0], [1], [0, 0, 1, 1], [], []>} : vector<64x24xf32>, vector<24x24xf32>, vector<64x24xf32> -> vector<64x24xf32>
    %c0_11 = arith.constant 0 : index
    %c0_12 = arith.constant 0 : index
    %16 = vector.load %arg5[%c0_11, %c0_12] : memref<1x24xf32, #tpu.memory_space<vmem>>, vector<1x24xf32>
    %17 = vector.broadcast %16 : vector<1x24xf32> to vector<64x24xf32>
    %18 = arith.addf %15, %17 : vector<64x24xf32>
    %cst_13 = arith.constant 5.000000e-01 : f32
    %19 = vector.broadcast %cst_13 : f32 to vector<64x24xf32>
    %20 = arith.mulf %19, %18 : vector<64x24xf32>
    %cst_14 = arith.constant 0.707106769 : f32
    %21 = vector.broadcast %cst_14 : f32 to vector<64x24xf32>
    %22 = arith.mulf %18, %21 : vector<64x24xf32>
    %23 = math.erf %22 : vector<64x24xf32>
    %cst_15 = arith.constant 1.000000e+00 : f32
    %24 = vector.broadcast %cst_15 : f32 to vector<64x24xf32>
    %25 = arith.addf %24, %23 : vector<64x24xf32>
    %26 = arith.mulf %20, %25 : vector<64x24xf32>
    %c0_16 = arith.constant 0 : index
    %c0_17 = arith.constant 0 : index
    %27 = vector.load %arg6[%c0_16, %c0_17] : memref<24x16xf32, #tpu.memory_space<vmem>>, vector<24x16xf32>
    %cst_18 = arith.constant dense<0.000000e+00> : vector<64x16xf32>
    %28 = tpu.matmul %26, %27, %cst_18 {dimension_numbers = #tpu.dot_dimension_numbers<[1], [0], [0], [1], [0, 0, 1, 1], [], []>} : vector<64x24xf32>, vector<24x16xf32>, vector<64x16xf32> -> vector<64x16xf32>
    %c0_19 = arith.constant 0 : index
    %c0_20 = arith.constant 0 : index
    %29 = vector.load %arg7[%c0_19, %c0_20] : memref<1x16xf32, #tpu.memory_space<vmem>>, vector<1x16xf32>
    %30 = vector.broadcast %29 : vector<1x16xf32> to vector<64x16xf32>
    %31 = arith.addf %28, %30 : vector<64x16xf32>
    %c0_21 = arith.constant 0 : index
    %c0_22 = arith.constant 0 : index
    %32 = vector.load %arg8[%c0_21, %c0_22] : memref<64x16xf32, #tpu.memory_space<vmem>>, vector<64x16xf32>
    tpu.vector_store %arg8[%c0_21, %c0_22], %31 {strides = array<i32>} : memref<64x16xf32, #tpu.memory_space<vmem>>, vector<64x16xf32>,
    return
  }
  func.func @transform_0(%arg0: i32) -> (i32, i32) {
    %c0_i32 = arith.constant 0 : i32
    %c0_i32_0 = arith.constant 0 : i32
    return %arg0, %c0_i32 : i32, i32
  }
  func.func @transform_1(%arg0: i32) -> (i32, i32) {
    %c0_i32 = arith.constant 0 : i32
    %c0_i32_0 = arith.constant 0 : i32
    %c0_i32_1 = arith.constant 0 : i32
    return %c0_i32, %c0_i32_0 : i32, i32
  }
  func.func @transform_2(%arg0: i32) -> (i32, i32) {
    %c0_i32 = arith.constant 0 : i32
    %c0_i32_0 = arith.constant 0 : i32
    %c0_i32_1 = arith.constant 0 : i32
    return %c0_i32, %c0_i32_0 : i32, i32
  }
  func.func @transform_3(%arg0: i32) -> (i32, i32) {
    %c0_i32 = arith.constant 0 : i32
    %c0_i32_0 = arith.constant 0 : i32
    %c0_i32_1 = arith.constant 0 : i32
    return %c0_i32, %c0_i32_0 : i32, i32
  }
  func.func @transform_4(%arg0: i32) -> (i32, i32) {
    %c0_i32 = arith.constant 0 : i32
    %c0_i32_0 = arith.constant 0 : i32
    %c0_i32_1 = arith.constant 0 : i32
    return %c0_i32, %c0_i32_0 : i32, i32
  }
  func.func @transform_5(%arg0: i32) -> (i32, i32) {
    %c0_i32 = arith.constant 0 : i32
    %c0_i32_0 = arith.constant 0 : i32
    %c0_i32_1 = arith.constant 0 : i32
    return %c0_i32, %c0_i32_0 : i32, i32
  }
  func.func @transform_6(%arg0: i32) -> (i32, i32) {
    %c0_i32 = arith.constant 0 : i32
    %c0_i32_0 = arith.constant 0 : i32
    %c0_i32_1 = arith.constant 0 : i32
    return %c0_i32, %c0_i32_0 : i32, i32
  }
  func.func @transform_7(%arg0: i32) -> (i32, i32) {
    %c0_i32 = arith.constant 0 : i32
    %c0_i32_0 = arith.constant 0 : i32
    return %arg0, %c0_i32 : i32, i32
  }
}

</mosaic_0001>

<llo_original>
// kernel: _lambda_.1
$region0: #{_lambda_.1}
  #allocation0 [shape = 'u32[]', space=smem, size = 0x4, offset = 0x4, fixed_abs, tag = 'smem constant byte address 0x4 - core index']
  #allocation1 [shape = 'u32[72,128]{1,0:T(1,128)}', space=vmem, size = 0x9000, scoped, tag = 'internal scratch']
  %s0 = inlined_call_operand.vmem [shape: f32[200,32], index: 0, kind: input, shape index: {}]
  %s1 = inlined_call_operand.vmem [shape: f32[32,24], index: 1, kind: input, shape index: {}]
  %s2 = inlined_call_operand.vmem [shape: f32[1,24], index: 2, kind: input, shape index: {}]
  %s3 = inlined_call_operand.vmem [shape: f32[24,24], index: 3, kind: input, shape index: {}]
  %s4 = inlined_call_operand.vmem [shape: f32[1,24], index: 4, kind: input, shape index: {}]
  %s5 = inlined_call_operand.vmem [shape: f32[24,16], index: 5, kind: input, shape index: {}]
  %s6 = inlined_call_operand.vmem [shape: f32[1,16], index: 6, kind: input, shape index: {}]
  %s7 = inlined_call_operand.vmem [shape: f32[200,16], index: 7, kind: output, shape index: {}]
  %s8 = sld [smem:[#allocation0]]
  $region109: #{_lambda_.1} parent=0
    _
  %s10 = ssub.s32 1, %s8
  %s11 = scalar_select 0, %s10, %s8
  $region1: #{_lambda_.1} parent=0
    #allocation2 [shape = 'u8[65536]{0}', space=vmem, size = 0x10000, scoped, tag = 'output window, operand 0']
    loop: start=0, step=1, limit=6
    $region2: #{_lambda_.1} parent=1 // loop_pre_header
      _
    $region3: #{_lambda_.1} parent=1 // loop_header
      %s13 = sphi 0, %s17
      %p14 = scmp.ge.s32.totalorder %s13, 6
      %s23 = sphi 0, %s25
      %s26 = sphi 0, %s23
      %s27 = sphi 0, %s26
      %s43 = sphi 0, %s27
      %s47 = sphi 0, %s47
      %s49 = sphi 0, %s47
      %s50 = sphi 0, %s49
      %s64 = sphi 0, %s50
      %s68 = sphi 0, %s68
      %s70 = sphi 0, %s68
      %s71 = sphi 0, %s70
      %s85 = sphi 0, %s71
      %s89 = sphi 0, %s89
      %s91 = sphi 0, %s89
      %s92 = sphi 0, %s91
      %s106 = sphi 0, %s92
      %s110 = sphi 0, %s110
      %s112 = sphi 0, %s110
      %s113 = sphi 0, %s112
      %s127 = sphi 0, %s113
      %s131 = sphi 0, %s131
      %s133 = sphi 0, %s131
      %s134 = sphi 0, %s133
      %s148 = sphi 0, %s134
      %s152 = sphi 0, %s152
      %s154 = sphi 0, %s152
      %s155 = sphi 0, %s154
      %s169 = sphi 0, %s155
      %s175 = sphi 0, %s177
      %s178 = sphi 0, %s175
      %s179 = sphi 0, %s178
      %s195 = sphi 0, %s179
    $region4: #{_lambda_.1} parent=1 // loop_header_branch
      %16 = sbr.rel (%p14) target = $region8
    $region5: #{_lambda_.1} parent=1 // loop_body
      %s18 = ssub.s32 %s13, 1
      %s19 = ssub.s32 %s13, 2
      %s20 = sadd.s32 %s13, 1
      %s21 = ssub.s32 %s13, %s20
      %p22 = scmp.eq.s32.totalorder %s21, 0
      %s24 = sadd.s32 %s23, 1
      %s25 = scalar_select %p22, %s23, %s24
      %p28 = pneg %p22
      %p29 = scmp.eq.s32.totalorder %s13, 3
      %p30 = por %p28, %p29
      %p31 = scmp.ne.s32.totalorder %s23, %s26
      %p32 = scmp.eq.s32.totalorder %s13, 0
      %p33 = por %p31, %p32
      %p34 = scmp.ne.s32.totalorder %s23, %s26
      %p35 = scmp.eq.s32.totalorder %s18, 3
      %p36 = por %p34, %p35
      %p37 = scmp.ne.s32.totalorder %s26, %s27
      %p38 = scmp.eq.s32.totalorder %s18, 0
      %p39 = por %p37, %p38
      %p40 = scmp.ne.s32.totalorder %s26, %s27
      %p41 = scmp.eq.s32.totalorder %s19, 3
      %p42 = por %p40, %p41
      %p44 = scmp.ne.s32.totalorder %s27, %s43
      %p45 = scmp.eq.s32.totalorder %s19, 0
      %p46 = por %p44, %p45
      %s48 = sadd.s32 %s47, 1
      %p51 = scmp.eq.s32.totalorder %s13, 3
      %p52 = scmp.ne.s32.totalorder %s47, %s49
      %p53 = scmp.eq.s32.totalorder %s13, 0
      %p54 = por %p52, %p53
      %p55 = scmp.ne.s32.totalorder %s47, %s49
      %p56 = scmp.eq.s32.totalorder %s18, 3
      %p57 = por %p55, %p56
      %p58 = scmp.ne.s32.totalorder %s49, %s50
      %p59 = scmp.eq.s32.totalorder %s18, 0
      %p60 = por %p58, %p59
      %p61 = scmp.ne.s32.totalorder %s49, %s50
      %p62 = scmp.eq.s32.totalorder %s19, 3
      %p63 = por %p61, %p62
      %p65 = scmp.ne.s32.totalorder %s50, %s64
      %p66 = scmp.eq.s32.totalorder %s19, 0
      %p67 = por %p65, %p66
      %s69 = sadd.s32 %s68, 1
      %p72 = scmp.eq.s32.totalorder %s13, 3
      %p73 = scmp.ne.s32.totalorder %s68, %s70
      %p74 = scmp.eq.s32.totalorder %s13, 0
      %p75 = por %p73, %p74
      %p76 = scmp.ne.s32.totalorder %s68, %s70
      %p77 = scmp.eq.s32.totalorder %s18, 3
      %p78 = por %p76, %p77
      %p79 = scmp.ne.s32.totalorder %s70, %s71
      %p80 = scmp.eq.s32.totalorder %s18, 0
      %p81 = por %p79, %p80
      %p82 = scmp.ne.s32.totalorder %s70, %s71
      %p83 = scmp.eq.s32.totalorder %s19, 3
      %p84 = por %p82, %p83
      %p86 = scmp.ne.s32.totalorder %s71, %s85
      %p87 = scmp.eq.s32.totalorder %s19, 0
      %p88 = por %p86, %p87
      %s90 = sadd.s32 %s89, 1
      %p93 = scmp.eq.s32.totalorder %s13, 3
      %p94 = scmp.ne.s32.totalorder %s89, %s91
      %p95 = scmp.eq.s32.totalorder %s13, 0
      %p96 = por %p94, %p95
      %p97 = scmp.ne.s32.totalorder %s89, %s91
      %p98 = scmp.eq.s32.totalorder %s18, 3
      %p99 = por %p97, %p98
      %p100 = scmp.ne.s32.totalorder %s91, %s92
      %p101 = scmp.eq.s32.totalorder %s18, 0
      %p102 = por %p100, %p101
      %p103 = scmp.ne.s32.totalorder %s91, %s92
      %p104 = scmp.eq.s32.totalorder %s19, 3
      %p105 = por %p103, %p104
      %p107 = scmp.ne.s32.totalorder %s92, %s106
      %p108 = scmp.eq.s32.totalorder %s19, 0
      %p109 = por %p107, %p108
      %s111 = sadd.s32 %s110, 1
      %p114 = scmp.eq.s32.totalorder %s13, 3
      %p115 = scmp.ne.s32.totalorder %s110, %s112
      %p116 = scmp.eq.s32.totalorder %s13, 0
      %p117 = por %p115, %p116
      %p118 = scmp.ne.s32.totalorder %s110, %s112
      %p119 = scmp.eq.s32.totalorder %s18, 3
      %p120 = por %p118, %p119
      %p121 = scmp.ne.s32.totalorder %s112, %s113
      %p122 = scmp.eq.s32.totalorder %s18, 0
      %p123 = por %p121, %p122
      %p124 = scmp.ne.s32.totalorder %s112, %s113
      %p125 = scmp.eq.s32.totalorder %s19, 3
      %p126 = por %p124, %p125
      %p128 = scmp.ne.s32.totalorder %s113, %s127
      %p129 = scmp.eq.s32.totalorder %s19, 0
      %p130 = por %p128, %p129
      %s132 = sadd.s32 %s131, 1
      %p135 = scmp.eq.s32.totalorder %s13, 3
      %p136 = scmp.ne.s32.totalorder %s131, %s133
      %p137 = scmp.eq.s32.totalorder %s13, 0
      %p138 = por %p136, %p137
      %p139 = scmp.ne.s32.totalorder %s131, %s133
      %p140 = scmp.eq.s32.totalorder %s18, 3
      %p141 = por %p139, %p140
      %p142 = scmp.ne.s32.totalorder %s133, %s134
      %p143 = scmp.eq.s32.totalorder %s18, 0
      %p144 = por %p142, %p143
      %p145 = scmp.ne.s32.totalorder %s133, %s134
      %p146 = scmp.eq.s32.totalorder %s19, 3
      %p147 = por %p145, %p146
      %p149 = scmp.ne.s32.totalorder %s134, %s148
      %p150 = scmp.eq.s32.totalorder %s19, 0
      %p151 = por %p149, %p150
      %s153 = sadd.s32 %s152, 1
      %p156 = scmp.eq.s32.totalorder %s13, 3
      %p157 = scmp.ne.s32.totalorder %s152, %s154
      %p158 = scmp.eq.s32.totalorder %s13, 0
      %p159 = por %p157, %p158
      %p160 = scmp.ne.s32.totalorder %s152, %s154
      %p161 = scmp.eq.s32.totalorder %s18, 3
      %p162 = por %p160, %p161
      %p163 = scmp.ne.s32.totalorder %s154, %s155
      %p164 = scmp.eq.s32.totalorder %s18, 0
      %p165 = por %p163, %p164
      %p166 = scmp.ne.s32.totalorder %s154, %s155
      %p167 = scmp.eq.s32.totalorder %s19, 3
      %p168 = por %p166, %p167
      %p170 = scmp.ne.s32.totalorder %s155, %s169
      %p171 = scmp.eq.s32.totalorder %s19, 0
      %p172 = por %p170, %p171
      %s173 = ssub.s32 %s13, %s20
      %p174 = scmp.eq.s32.totalorder %s173, 0
      %s176 = sadd.s32 %s175, 1
      %s177 = scalar_select %p174, %s175, %s176
      %p180 = pneg %p174
      %p181 = scmp.eq.s32.totalorder %s13, 3
      %p182 = por %p180, %p181
      %p183 = scmp.ne.s32.totalorder %s175, %s178
      %p184 = scmp.eq.s32.totalorder %s13, 0
      %p185 = por %p183, %p184
      %p186 = scmp.ne.s32.totalorder %s175, %s178
      %p187 = scmp.eq.s32.totalorder %s18, 3
      %p188 = por %p186, %p187
      %p189 = scmp.ne.s32.totalorder %s178, %s179
      %p190 = scmp.eq.s32.totalorder %s18, 0
      %p191 = por %p189, %p190
      %p192 = scmp.ne.s32.totalorder %s178, %s179
      %p193 = scmp.eq.s32.totalorder %s19, 3
      %p194 = por %p192, %p193
      %p196 = scmp.ne.s32.totalorder %s179, %s195
      %p197 = scmp.eq.s32.totalorder %s19, 0
      %p198 = por %p196, %p197
      %p199 = scmp.le.s32.totalorder 1, %s13
      %p200 = scmp.lt.s32.totalorder %s13, 5
      %p201 = pnand %p199, %p200
      %p202 = pneg %p201
      // Predicated region
      $region9: #{_lambda_.1} parent=5 // pred_check
        _
      $region10: #{_lambda_.1} parent=5 // pred_check_branch
        %204 = sbr.rel (%p201) target = $region12
      $region11: #{_lambda_.1} parent=5 // pred_region
        %s205 = ssub.s32 %s13, 1
        // Predicated region
        $region13: #{_lambda_.1} parent=11 // pred_check
          %p206 = pneg %p60
        $region14: #{_lambda_.1} parent=11 // pred_check_branch
          %208 = sbr.rel (%p206) target = $region16
        $region15: #{_lambda_.1} parent=11 // pred_region
          _
        $region16: #{_lambda_.1} parent=11 // pred_fallthru
          _
        // Predicated region
        $region17: #{_lambda_.1} parent=11 // pred_check
          %p209 = pneg %p81
        $region18: #{_lambda_.1} parent=11 // pred_check_branch
          %211 = sbr.rel (%p209) target = $region20
        $region19: #{_lambda_.1} parent=11 // pred_region
          _
        $region20: #{_lambda_.1} parent=11 // pred_fallthru
          _
        // Predicated region
        $region21: #{_lambda_.1} parent=11 // pred_check
          %p212 = pneg %p102
        $region22: #{_lambda_.1} parent=11 // pred_check_branch
          %214 = sbr.rel (%p212) target = $region24
        $region23: #{_lambda_.1} parent=11 // pred_region
          _
        $region24: #{_lambda_.1} parent=11 // pred_fallthru
          _
        // Predicated region
        $region25: #{_lambda_.1} parent=11 // pred_check
          %p215 = pneg %p123
        $region26: #{_lambda_.1} parent=11 // pred_check_branch
          %217 = sbr.rel (%p215) target = $region28
        $region27: #{_lambda_.1} parent=11 // pred_region
          _
        $region28: #{_lambda_.1} parent=11 // pred_fallthru
          _
        // Predicated region
        $region29: #{_lambda_.1} parent=11 // pred_check
          %p218 = pneg %p144
        $region30: #{_lambda_.1} parent=11 // pred_check_branch
          %220 = sbr.rel (%p218) target = $region32
        $region31: #{_lambda_.1} parent=11 // pred_region
          _
        $region32: #{_lambda_.1} parent=11 // pred_fallthru
          _
        // Predicated region
        $region33: #{_lambda_.1} parent=11 // pred_check
          %p221 = pneg %p165
        $region34: #{_lambda_.1} parent=11 // pred_check_branch
          %223 = sbr.rel (%p221) target = $region36
        $region35: #{_lambda_.1} parent=11 // pred_region
          _
        $region36: #{_lambda_.1} parent=11 // pred_fallthru
          _
      $region12: #{_lambda_.1} parent=5 // pred_fallthru
        _
      %p224 = scmp.lt.s32.totalorder %s13, 4
      // Predicated region
      $region37: #{_lambda_.1} parent=5 // pred_check
        %p225 = pneg %p224
      $region38: #{_lambda_.1} parent=5 // pred_check_branch
        %227 = sbr.rel (%p225) target = $region40
      $region39: #{_lambda_.1} parent=5 // pred_region
        // Predicated region
        $region41: #{_lambda_.1} parent=39 // pred_check
          %p228 = pneg %p33
        $region42: #{_lambda_.1} parent=39 // pred_check_branch
          %230 = sbr.rel (%p228) target = $region44
        $region43: #{_lambda_.1} parent=39 // pred_region
          %s231 = smul.u32 8, %s13
          %s232 = ssub.s32 25, %s231
          %p233 = scmp.lt.s32.totalorder %s232, 8
          %s234 = scalar_select %p233, %s232, 8
          %s235 = smul.u32 8, %s234
          %p236 = scmp.lt.s32.totalorder %s231, 24
          %s237 = scalar_select %p236, %s231, 24
          %s238 = smul.addr %s237, 8
          %s239 = scalar_lea.vmem %s0, %s238
          %s240 = smul.u32 8, %s13
          %s241 = ssub.s32 25, %s240
          %p242 = scmp.lt.s32.totalorder %s241, 8
          %s243 = scalar_select %p242, %s241, 8
          %s244 = smul.u32 8, %s243
        $region44: #{_lambda_.1} parent=39 // pred_fallthru
          _
      $region40: #{_lambda_.1} parent=5 // pred_fallthru
        _
      %p245 = scmp.le.s32.totalorder 1, %s13
      %p246 = scmp.lt.s32.totalorder %s13, 5
      %p247 = pnand %p245, %p246
      %p248 = pneg %p247
      // Predicated region
      $region45: #{_lambda_.1} parent=5 // pred_check
        _
      $region46: #{_lambda_.1} parent=5 // pred_check_branch
        %250 = sbr.rel (%p247) target = $region48
      $region47: #{_lambda_.1} parent=5 // pred_region
        %s251 = ssub.s32 %s13, 1
        %s252 = smul.u32 8, %s18
        %s253 = ssub.s32 25, %s252
        %p254 = scmp.lt.s32.totalorder %s253, 8
        %s255 = scalar_select %p254, %s253, 8
        %s256 = smul.u32 8, %s255
        %p257 = scmp.lt.s32.totalorder %s252, 24
        %s258 = scalar_select %p257, %s252, 24
        %s259 = smul.addr %s258, 8
        %s260 = scalar_lea.vmem %s0, %s259
        %p261 = pneg %p39
        %p262 = pneg %p36
        %p263 = pneg %p60
        %p264 = pneg %p57
        %p265 = pneg %p81
        %p266 = pneg %p78
        %p267 = pneg %p102
        %p268 = pneg %p99
        %p269 = pneg %p123
        %p270 = pneg %p120
        %p271 = pneg %p144
        %p272 = pneg %p141
        %p273 = pneg %p165
        %p274 = pneg %p162
        %p275 = pneg %p191
        %p276 = pneg %p188
        %s277 = sand.u32 %s178, 1
        %s278 = sand.u32 %s178, 1
        %s279 = smul.addr %s278, 64
        %s280 = scalar_lea.vmem [#allocation2], %s279
        %s281 = smul.u32 8, %s18
        %s282 = ssub.s32 25, %s281
        %p283 = scmp.lt.s32.totalorder %s282, 8
        %s284 = scalar_select %p283, %s282, 8
        %s285 = smul.u32 8, %s284
        %p286 = scmp.lt.s32.totalorder %s281, 24
        %s287 = scalar_select %p286, %s281, 24
        %s288 = smul.addr %s287, 8
        %s289 = scalar_lea.vmem %s0, %s288
        %s290 = smul.u32 8, %s18
        %s291 = ssub.s32 25, %s290
        %p292 = scmp.lt.s32.totalorder %s291, 8
        %s293 = scalar_select %p292, %s291, 8
        %s294 = smul.u32 8, %s293
        %s295 = smul.u32 8, %s18
        %s296 = ssub.s32 25, %s295
        %p297 = scmp.lt.s32.totalorder %s296, 8
        %s298 = scalar_select %p297, %s296, 8
        %s299 = smul.u32 8, %s298
        %v300 = vld [vmem:[%s289] sm:$0xff]
        %v301 = vld [vmem:[%s289 + $0x8] sm:$0xff]
        %v302 = vld [vmem:[%s289 + $0x10] sm:$0xff]
        %v303 = vld [vmem:[%s289 + $0x18] sm:$0xff]
        %v304 = vld [vmem:[%s289 + $0x20] sm:$0xff]
        %v305 = vld [vmem:[%s289 + $0x28] sm:$0xff]
        %v306 = vld [vmem:[%s289 + $0x30] sm:$0xff]
        %v307 = vld [vmem:[%s289 + $0x38] sm:$0xff]
        %v308 = vld [vmem:[%s1] sm:$0xff]
        %v309 = vld [vmem:[%s1 + $0x8] sm:$0xff]
        %v310 = vld [vmem:[%s1 + $0x10] sm:$0xff]
        %v311 = vld [vmem:[%s1 + $0x18] sm:$0xff]
        %v312 = vld [vmem:[%s2] sm:$0x1]
        %v314 = vperm.slane %v312, 0
        %vm316 = vcmask 261120
        %v318 = vsel %vm316, %v300, 0
        %v321 = vsel %vm316, %v301, 0
        %v324 = vsel %vm316, %v302, 0
        %v327 = vsel %vm316, %v303, 0
        %v330 = vsel %vm316, %v304, 0
        %v333 = vsel %vm316, %v305, 0
        %v336 = vsel %vm316, %v306, 0
        %v339 = vsel %vm316, %v307, 0
        %341 = vmatpush.msra.mxu0 0.0
        %342 = vmatpush.msra.mxu0 0.0
        %343 = vmatpush.msra.mxu0 0.0
        %344 = vmatpush.msra.mxu0 0.0
        %345 = vmatpush.msra.mxu0 0.0
        %346 = vmatpush.msra.mxu0 0.0
        %347 = vmatpush.msra.mxu0 0.0
        %348 = vmatpush.msra.mxu0 0.0
        %349 = vmatpush.msra.mxu0 0.0
        %350 = vmatpush.msra.mxu0 0.0
        %351 = vmatpush.msra.mxu0 0.0
        %352 = vmatpush.msra.mxu0 0.0
        %353 = vmatpush.msra.mxu0 %v311
        %354 = vmatpush.msra.mxu0 %v310
        %355 = vmatpush.msra.mxu0 %v309
        %356 = vmatpush.msra.mxu0 %v308
        %357 = vmatmul.f32.gmra.mxu0 %v318
        %v358 = vpop.f32.mrf.mxu0
        %v359 = vadd.f32 %v314, %v358
        %360 = vmatmul.f32.gmra.mxu0 %v321
        %v361 = vpop.f32.mrf.mxu0
        %v362 = vadd.f32 %v314, %v361
        %363 = vmatmul.f32.gmra.mxu0 %v324
        %v364 = vpop.f32.mrf.mxu0
        %v365 = vadd.f32 %v314, %v364
        %366 = vmatmul.f32.gmra.mxu0 %v327
        %v367 = vpop.f32.mrf.mxu0
        %v368 = vadd.f32 %v314, %v367
        %369 = vmatmul.f32.gmra.mxu0 %v330
        %v370 = vpop.f32.mrf.mxu0
        %v371 = vadd.f32 %v314, %v370
        %372 = vmatmul.f32.gmra.mxu0 %v333
        %v373 = vpop.f32.mrf.mxu0
        %v374 = vadd.f32 %v314, %v373
        %375 = vmatmul.f32.gmra.mxu0 %v336
        %v376 = vpop.f32.mrf.mxu0
        %v377 = vadd.f32 %v314, %v376
        %378 = vmatmul.f32.gmra.mxu0 %v339
        %v379 = vpop.f32.mrf.mxu0
        %v380 = vadd.f32 %v314, %v379
        %381 = vdwg.mxu0
        %v382 = vmul.f32 %v359, 0.5
        %v383 = vmul.f32 %v362, 0.5
        %v384 = vmul.f32 %v365, 0.5
        %v385 = vmul.f32 %v368, 0.5
        %v386 = vmul.f32 %v371, 0.5
        %v387 = vmul.f32 %v374, 0.5
        %v388 = vmul.f32 %v377, 0.5
        %v389 = vmul.f32 %v380, 0.5
        %v390 = vmul.f32 %v359, 0.70710677
        %v391 = vmul.f32 %v362, 0.70710677
        %v392 = vmul.f32 %v365, 0.70710677
        %v393 = vmul.f32 %v368, 0.70710677
        %v394 = vmul.f32 %v371, 0.70710677
        %v395 = vmul.f32 %v374, 0.70710677
        %v396 = vmul.f32 %v377, 0.70710677
        %v397 = vmul.f32 %v380, 0.70710677
        %v398 = vmul.f32 %v390, %v390
        %v399 = vmin.f32 16.0, %v398
        %v400 = vmul.f32 %v399, 2.1237322e-06
        %v401 = vadd.f32 %v400, 0.00028619796
        %v402 = vmul.f32 %v399, %v401
        %v403 = vadd.f32 %v402, 0.0036580483
        %v404 = vmul.f32 %v399, %v403
        %v405 = vadd.f32 %v404, 0.05243302
        %v406 = vmul.f32 %v399, %v405
        %v407 = vadd.f32 %v406, 0.18741608
        %v408 = vmul.f32 %v399, %v407
        %v409 = vadd.f32 %v408, 1.1283791
        %v410 = vmul.f32 %v390, %v409
        %v411 = vmul.f32 %v399, 3.8918573e-05
        %v412 = vadd.f32 %v411, 0.001143296
        %v413 = vmul.f32 %v399, %v412
        %v414 = vadd.f32 %v413, 0.014752088
        %v415 = vmul.f32 %v399, %v414
        %v416 = vadd.f32 %v415, 0.112945676
        %v417 = vmul.f32 %v399, %v416
        %v418 = vadd.f32 %v417, 0.4994258
        %v419 = vmul.f32 %v399, %v418
        %v420 = vadd.f32 %v419, 1.0
        %v421 = vrcp.pop %v420
        %v422 = vmul.f32 %v420, %v421
        %v423 = vsub.f32 1.0, %v422
        %v424 = vmul.f32 %v421, %v423
        %v425 = vadd.f32 %v421, %v424
        %vm426 = vweird.f32 %v420
        %vm427 = vweird.f32 %v421
        %vm428 = vmor %vm426, %vm427
        %v429 = vsel %vm428, %v421, %v425
        %v430 = vand.u32 2147483647, %v420
        %vm431 = vcmp.eq.f32.partialorder %v430, 8.507059e+37
        %v432 = vand.u32 %v420, 2147483648
        %v433 = vor.u32 1.1754944e-38, %v432
        %v434 = vsel %vm431, %v433, %v429
        %v435 = vmul.f32 %v410, %v434
        %v436 = vmin.f32 %v435, 1.0
        %v437 = vmax.f32 %v436, -1.0
        %v438 = vmul.f32 %v391, %v391
        %v439 = vmin.f32 16.0, %v438
        %v440 = vmul.f32 %v439, 2.1237322e-06
        %v441 = vadd.f32 %v440, 0.00028619796
        %v442 = vmul.f32 %v439, %v441
        %v443 = vadd.f32 %v442, 0.0036580483
        %v444 = vmul.f32 %v439, %v443
        %v445 = vadd.f32 %v444, 0.05243302
        %v446 = vmul.f32 %v439, %v445
        %v447 = vadd.f32 %v446, 0.18741608
        %v448 = vmul.f32 %v439, %v447
        %v449 = vadd.f32 %v448, 1.1283791
        %v450 = vmul.f32 %v391, %v449
        %v451 = vmul.f32 %v439, 3.8918573e-05
        %v452 = vadd.f32 %v451, 0.001143296
        %v453 = vmul.f32 %v439, %v452
        %v454 = vadd.f32 %v453, 0.014752088
        %v455 = vmul.f32 %v439, %v454
        %v456 = vadd.f32 %v455, 0.112945676
        %v457 = vmul.f32 %v439, %v456
        %v458 = vadd.f32 %v457, 0.4994258
        %v459 = vmul.f32 %v439, %v458
        %v460 = vadd.f32 %v459, 1.0
        %v461 = vrcp.pop %v460
        %v462 = vmul.f32 %v460, %v461
        %v463 = vsub.f32 1.0, %v462
        %v464 = vmul.f32 %v461, %v463
        %v465 = vadd.f32 %v461, %v464
        %vm466 = vweird.f32 %v460
        %vm467 = vweird.f32 %v461
        %vm468 = vmor %vm466, %vm467
        %v469 = vsel %vm468, %v461, %v465
        %v470 = vand.u32 2147483647, %v460
        %vm471 = vcmp.eq.f32.partialorder %v470, 8.507059e+37
        %v472 = vand.u32 %v460, 2147483648
        %v473 = vor.u32 1.1754944e-38, %v472
        %v474 = vsel %vm471, %v473, %v469
        %v475 = vmul.f32 %v450, %v474
        %v476 = vmin.f32 %v475, 1.0
        %v477 = vmax.f32 %v476, -1.0
        %v478 = vmul.f32 %v392, %v392
        %v479 = vmin.f32 16.0, %v478
        %v480 = vmul.f32 %v479, 2.1237322e-06
        %v481 = vadd.f32 %v480, 0.00028619796
        %v482 = vmul.f32 %v479, %v481
        %v483 = vadd.f32 %v482, 0.0036580483
        %v484 = vmul.f32 %v479, %v483
        %v485 = vadd.f32 %v484, 0.05243302
        %v486 = vmul.f32 %v479, %v485
        %v487 = vadd.f32 %v486, 0.18741608
        %v488 = vmul.f32 %v479, %v487
        %v489 = vadd.f32 %v488, 1.1283791
        %v490 = vmul.f32 %v392, %v489
        %v491 = vmul.f32 %v479, 3.8918573e-05
        %v492 = vadd.f32 %v491, 0.001143296
        %v493 = vmul.f32 %v479, %v492
        %v494 = vadd.f32 %v493, 0.014752088
        %v495 = vmul.f32 %v479, %v494
        %v496 = vadd.f32 %v495, 0.112945676
        %v497 = vmul.f32 %v479, %v496
        %v498 = vadd.f32 %v497, 0.4994258
        %v499 = vmul.f32 %v479, %v498
        %v500 = vadd.f32 %v499, 1.0
        %v501 = vrcp.pop %v500
        %v502 = vmul.f32 %v500, %v501
        %v503 = vsub.f32 1.0, %v502
        %v504 = vmul.f32 %v501, %v503
        %v505 = vadd.f32 %v501, %v504
        %vm506 = vweird.f32 %v500
        %vm507 = vweird.f32 %v501
        %vm508 = vmor %vm506, %vm507
        %v509 = vsel %vm508, %v501, %v505
        %v510 = vand.u32 2147483647, %v500
        %vm511 = vcmp.eq.f32.partialorder %v510, 8.507059e+37
        %v512 = vand.u32 %v500, 2147483648
        %v513 = vor.u32 1.1754944e-38, %v512
        %v514 = vsel %vm511, %v513, %v509
        %v515 = vmul.f32 %v490, %v514
        %v516 = vmin.f32 %v515, 1.0
        %v517 = vmax.f32 %v516, -1.0
        %v518 = vmul.f32 %v393, %v393
        %v519 = vmin.f32 16.0, %v518
        %v520 = vmul.f32 %v519, 2.1237322e-06
        %v521 = vadd.f32 %v520, 0.00028619796
        %v522 = vmul.f32 %v519, %v521
        %v523 = vadd.f32 %v522, 0.0036580483
        %v524 = vmul.f32 %v519, %v523
        %v525 = vadd.f32 %v524, 0.05243302
        %v526 = vmul.f32 %v519, %v525
        %v527 = vadd.f32 %v526, 0.18741608
        %v528 = vmul.f32 %v519, %v527
        %v529 = vadd.f32 %v528, 1.1283791
        %v530 = vmul.f32 %v393, %v529
        %v531 = vmul.f32 %v519, 3.8918573e-05
        %v532 = vadd.f32 %v531, 0.001143296
        %v533 = vmul.f32 %v519, %v532
        %v534 = vadd.f32 %v533, 0.014752088
        %v535 = vmul.f32 %v519, %v534
        %v536 = vadd.f32 %v535, 0.112945676
        %v537 = vmul.f32 %v519, %v536
        %v538 = vadd.f32 %v537, 0.4994258
        %v539 = vmul.f32 %v519, %v538
        %v540 = vadd.f32 %v539, 1.0
        %v541 = vrcp.pop %v540
        %v542 = vmul.f32 %v540, %v541
        %v543 = vsub.f32 1.0, %v542
        %v544 = vmul.f32 %v541, %v543
        %v545 = vadd.f32 %v541, %v544
        %vm546 = vweird.f32 %v540
        %vm547 = vweird.f32 %v541
        %vm548 = vmor %vm546, %vm547
        %v549 = vsel %vm548, %v541, %v545
        %v550 = vand.u32 2147483647, %v540
        %vm551 = vcmp.eq.f32.partialorder %v550, 8.507059e+37
        %v552 = vand.u32 %v540, 2147483648
        %v553 = vor.u32 1.1754944e-38, %v552
        %v554 = vsel %vm551, %v553, %v549
        %v555 = vmul.f32 %v530, %v554
        %v556 = vmin.f32 %v555, 1.0
        %v557 = vmax.f32 %v556, -1.0
        %v558 = vmul.f32 %v394, %v394
        %v559 = vmin.f32 16.0, %v558
        %v560 = vmul.f32 %v559, 2.1237322e-06
        %v561 = vadd.f32 %v560, 0.00028619796
        %v562 = vmul.f32 %v559, %v561
        %v563 = vadd.f32 %v562, 0.0036580483
        %v564 = vmul.f32 %v559, %v563
        %v565 = vadd.f32 %v564, 0.05243302
        %v566 = vmul.f32 %v559, %v565
        %v567 = vadd.f32 %v566, 0.18741608
        %v568 = vmul.f32 %v559, %v567
        %v569 = vadd.f32 %v568, 1.1283791
        %v570 = vmul.f32 %v394, %v569
        %v571 = vmul.f32 %v559, 3.8918573e-05
        %v572 = vadd.f32 %v571, 0.001143296
        %v573 = vmul.f32 %v559, %v572
        %v574 = vadd.f32 %v573, 0.014752088
        %v575 = vmul.f32 %v559, %v574
        %v576 = vadd.f32 %v575, 0.112945676
        %v577 = vmul.f32 %v559, %v576
        %v578 = vadd.f32 %v577, 0.4994258
        %v579 = vmul.f32 %v559, %v578
        %v580 = vadd.f32 %v579, 1.0
        %v581 = vrcp.pop %v580
        %v582 = vmul.f32 %v580, %v581
        %v583 = vsub.f32 1.0, %v582
        %v584 = vmul.f32 %v581, %v583
        %v585 = vadd.f32 %v581, %v584
        %vm586 = vweird.f32 %v580
        %vm587 = vweird.f32 %v581
        %vm588 = vmor %vm586, %vm587
        %v589 = vsel %vm588, %v581, %v585
        %v590 = vand.u32 2147483647, %v580
        %vm591 = vcmp.eq.f32.partialorder %v590, 8.507059e+37
        %v592 = vand.u32 %v580, 2147483648
        %v593 = vor.u32 1.1754944e-38, %v592
        %v594 = vsel %vm591, %v593, %v589
        %v595 = vmul.f32 %v570, %v594
        %v596 = vmin.f32 %v595, 1.0
        %v597 = vmax.f32 %v596, -1.0
        %v598 = vmul.f32 %v395, %v395
        %v599 = vmin.f32 16.0, %v598
        %v600 = vmul.f32 %v599, 2.1237322e-06
        %v601 = vadd.f32 %v600, 0.00028619796
        %v602 = vmul.f32 %v599, %v601
        %v603 = vadd.f32 %v602, 0.0036580483
        %v604 = vmul.f32 %v599, %v603
        %v605 = vadd.f32 %v604, 0.05243302
        %v606 = vmul.f32 %v599, %v605
        %v607 = vadd.f32 %v606, 0.18741608
        %v608 = vmul.f32 %v599, %v607
        %v609 = vadd.f32 %v608, 1.1283791
        %v610 = vmul.f32 %v395, %v609
        %v611 = vmul.f32 %v599, 3.8918573e-05
        %v612 = vadd.f32 %v611, 0.001143296
        %v613 = vmul.f32 %v599, %v612
        %v614 = vadd.f32 %v613, 0.014752088
        %v615 = vmul.f32 %v599, %v614
        %v616 = vadd.f32 %v615, 0.112945676
        %v617 = vmul.f32 %v599, %v616
        %v618 = vadd.f32 %v617, 0.4994258
        %v619 = vmul.f32 %v599, %v618
        %v620 = vadd.f32 %v619, 1.0
        %v621 = vrcp.pop %v620
        %v622 = vmul.f32 %v620, %v621
        %v623 = vsub.f32 1.0, %v622
        %v624 = vmul.f32 %v621, %v623
        %v625 = vadd.f32 %v621, %v624
        %vm626 = vweird.f32 %v620
        %vm627 = vweird.f32 %v621
        %vm628 = vmor %vm626, %vm627
        %v629 = vsel %vm628, %v621, %v625
        %v630 = vand.u32 2147483647, %v620
        %vm631 = vcmp.eq.f32.partialorder %v630, 8.507059e+37
        %v632 = vand.u32 %v620, 2147483648
        %v633 = vor.u32 1.1754944e-38, %v632
        %v634 = vsel %vm631, %v633, %v629
        %v635 = vmul.f32 %v610, %v634
        %v636 = vmin.f32 %v635, 1.0
        %v637 = vmax.f32 %v636, -1.0
        %v638 = vmul.f32 %v396, %v396
        %v639 = vmin.f32 16.0, %v638
        %v640 = vmul.f32 %v639, 2.1237322e-06
        %v641 = vadd.f32 %v640, 0.00028619796
        %v642 = vmul.f32 %v639, %v641
        %v643 = vadd.f32 %v642, 0.0036580483
        %v644 = vmul.f32 %v639, %v643
        %v645 = vadd.f32 %v644, 0.05243302
        %v646 = vmul.f32 %v639, %v645
        %v647 = vadd.f32 %v646, 0.18741608
        %v648 = vmul.f32 %v639, %v647
        %v649 = vadd.f32 %v648, 1.1283791
        %v650 = vmul.f32 %v396, %v649
        %v651 = vmul.f32 %v639, 3.8918573e-05
        %v652 = vadd.f32 %v651, 0.001143296
        %v653 = vmul.f32 %v639, %v652
        %v654 = vadd.f32 %v653, 0.014752088
        %v655 = vmul.f32 %v639, %v654
        %v656 = vadd.f32 %v655, 0.112945676
        %v657 = vmul.f32 %v639, %v656
        %v658 = vadd.f32 %v657, 0.4994258
        %v659 = vmul.f32 %v639, %v658
        %v660 = vadd.f32 %v659, 1.0
        %v661 = vrcp.pop %v660
        %v662 = vmul.f32 %v660, %v661
        %v663 = vsub.f32 1.0, %v662
        %v664 = vmul.f32 %v661, %v663
        %v665 = vadd.f32 %v661, %v664
        %vm666 = vweird.f32 %v660
        %vm667 = vweird.f32 %v661
        %vm668 = vmor %vm666, %vm667
        %v669 = vsel %vm668, %v661, %v665
        %v670 = vand.u32 2147483647, %v660
        %vm671 = vcmp.eq.f32.partialorder %v670, 8.507059e+37
        %v672 = vand.u32 %v660, 2147483648
        %v673 = vor.u32 1.1754944e-38, %v672
        %v674 = vsel %vm671, %v673, %v669
        %v675 = vmul.f32 %v650, %v674
        %v676 = vmin.f32 %v675, 1.0
        %v677 = vmax.f32 %v676, -1.0
        %v678 = vmul.f32 %v397, %v397
        %v679 = vmin.f32 16.0, %v678
        %v680 = vmul.f32 %v679, 2.1237322e-06
        %v681 = vadd.f32 %v680, 0.00028619796
        %v682 = vmul.f32 %v679, %v681
        %v683 = vadd.f32 %v682, 0.0036580483
        %v684 = vmul.f32 %v679, %v683
        %v685 = vadd.f32 %v684, 0.05243302
        %v686 = vmul.f32 %v679, %v685
        %v687 = vadd.f32 %v686, 0.18741608
        %v688 = vmul.f32 %v679, %v687
        %v689 = vadd.f32 %v688, 1.1283791
        %v690 = vmul.f32 %v397, %v689
        %v691 = vmul.f32 %v679, 3.8918573e-05
        %v692 = vadd.f32 %v691, 0.001143296
        %v693 = vmul.f32 %v679, %v692
        %v694 = vadd.f32 %v693, 0.014752088
        %v695 = vmul.f32 %v679, %v694
        %v696 = vadd.f32 %v695, 0.112945676
        %v697 = vmul.f32 %v679, %v696
        %v698 = vadd.f32 %v697, 0.4994258
        %v699 = vmul.f32 %v679, %v698
        %v700 = vadd.f32 %v699, 1.0
        %v701 = vrcp.pop %v700
        %v702 = vmul.f32 %v700, %v701
        %v703 = vsub.f32 1.0, %v702
        %v704 = vmul.f32 %v701, %v703
        %v705 = vadd.f32 %v701, %v704
        %vm706 = vweird.f32 %v700
        %vm707 = vweird.f32 %v701
        %vm708 = vmor %vm706, %vm707
        %v709 = vsel %vm708, %v701, %v705
        %v710 = vand.u32 2147483647, %v700
        %vm711 = vcmp.eq.f32.partialorder %v710, 8.507059e+37
        %v712 = vand.u32 %v700, 2147483648
        %v713 = vor.u32 1.1754944e-38, %v712
        %v714 = vsel %vm711, %v713, %v709
        %v715 = vmul.f32 %v690, %v714
        %v716 = vmin.f32 %v715, 1.0
        %v717 = vmax.f32 %v716, -1.0
        %v718 = vadd.f32 %v437, 1.0
        %v719 = vadd.f32 %v477, 1.0
        %v720 = vadd.f32 %v517, 1.0
        %v721 = vadd.f32 %v557, 1.0
        %v722 = vadd.f32 %v597, 1.0
        %v723 = vadd.f32 %v637, 1.0
        %v724 = vadd.f32 %v677, 1.0
        %v725 = vadd.f32 %v717, 1.0
        %v726 = vmul.f32 %v382, %v718
        %v727 = vmul.f32 %v383, %v719
        %v728 = vmul.f32 %v384, %v720
        %v729 = vmul.f32 %v385, %v721
        %v730 = vmul.f32 %v386, %v722
        %v731 = vmul.f32 %v387, %v723
        %v732 = vmul.f32 %v388, %v724
        %v733 = vmul.f32 %v389, %v725
        %v734 = vld [vmem:[%s3] sm:$0xff]
        %v735 = vld [vmem:[%s3 + $0x8] sm:$0xff]
        %v736 = vld [vmem:[%s3 + $0x10] sm:$0xff]
        %v737 = vld [vmem:[%s4] sm:$0x1]
        %v739 = vperm.slane %v737, 0
        %vm741 = vcmask 195584
        %v743 = vsel %vm741, %v726, 0
        %v746 = vsel %vm741, %v727, 0
        %v749 = vsel %vm741, %v728, 0
        %v752 = vsel %vm741, %v729, 0
        %v755 = vsel %vm741, %v730, 0
        %v758 = vsel %vm741, %v731, 0
        %v761 = vsel %vm741, %v732, 0
        %v764 = vsel %vm741, %v733, 0
        %766 = vmatpush.msra.mxu0 0.0
        %767 = vmatpush.msra.mxu0 0.0
        %768 = vmatpush.msra.mxu0 0.0
        %769 = vmatpush.msra.mxu0 0.0
        %770 = vmatpush.msra.mxu0 0.0
        %771 = vmatpush.msra.mxu0 0.0
        %772 = vmatpush.msra.mxu0 0.0
        %773 = vmatpush.msra.mxu0 0.0
        %774 = vmatpush.msra.mxu0 0.0
        %775 = vmatpush.msra.mxu0 0.0
        %776 = vmatpush.msra.mxu0 0.0
        %777 = vmatpush.msra.mxu0 0.0
        %778 = vmatpush.msra.mxu0 0.0
        %779 = vmatpush.msra.mxu0 %v736
        %780 = vmatpush.msra.mxu0 %v735
        %781 = vmatpush.msra.mxu0 %v734
        %782 = vmatmul.f32.gmra.mxu0 %v743
        %v783 = vpop.f32.mrf.mxu0
        %v784 = vadd.f32 %v739, %v783
        %785 = vmatmul.f32.gmra.mxu0 %v746
        %v786 = vpop.f32.mrf.mxu0
        %v787 = vadd.f32 %v739, %v786
        %788 = vmatmul.f32.gmra.mxu0 %v749
        %v789 = vpop.f32.mrf.mxu0
        %v790 = vadd.f32 %v739, %v789
        %791 = vmatmul.f32.gmra.mxu0 %v752
        %v792 = vpop.f32.mrf.mxu0
        %v793 = vadd.f32 %v739, %v792
        %794 = vmatmul.f32.gmra.mxu0 %v755
        %v795 = vpop.f32.mrf.mxu0
        %v796 = vadd.f32 %v739, %v795
        %797 = vmatmul.f32.gmra.mxu0 %v758
        %v798 = vpop.f32.mrf.mxu0
        %v799 = vadd.f32 %v739, %v798
        %800 = vmatmul.f32.gmra.mxu0 %v761
        %v801 = vpop.f32.mrf.mxu0
        %v802 = vadd.f32 %v739, %v801
        %803 = vmatmul.f32.gmra.mxu0 %v764
        %v804 = vpop.f32.mrf.mxu0
        %v805 = vadd.f32 %v739, %v804
        %806 = vdwg.mxu0
        %v807 = vmul.f32 %v784, 0.5
        %v808 = vmul.f32 %v787, 0.5
        %v809 = vmul.f32 %v790, 0.5
        %v810 = vmul.f32 %v793, 0.5
        %v811 = vmul.f32 %v796, 0.5
        %v812 = vmul.f32 %v799, 0.5
        %v813 = vmul.f32 %v802, 0.5
        %v814 = vmul.f32 %v805, 0.5
        %v815 = vmul.f32 %v784, 0.70710677
        %v816 = vmul.f32 %v787, 0.70710677
        %v817 = vmul.f32 %v790, 0.70710677
        %v818 = vmul.f32 %v793, 0.70710677
        %v819 = vmul.f32 %v796, 0.70710677
        %v820 = vmul.f32 %v799, 0.70710677
        %v821 = vmul.f32 %v802, 0.70710677
        %v822 = vmul.f32 %v805, 0.70710677
        %v823 = vmul.f32 %v815, %v815
        %v824 = vmin.f32 16.0, %v823
        %v825 = vmul.f32 %v824, 2.1237322e-06
        %v826 = vadd.f32 %v825, 0.00028619796
        %v827 = vmul.f32 %v824, %v826
        %v828 = vadd.f32 %v827, 0.0036580483
        %v829 = vmul.f32 %v824, %v828
        %v830 = vadd.f32 %v829, 0.05243302
        %v831 = vmul.f32 %v824, %v830
        %v832 = vadd.f32 %v831, 0.18741608
        %v833 = vmul.f32 %v824, %v832
        %v834 = vadd.f32 %v833, 1.1283791
        %v835 = vmul.f32 %v815, %v834
        %v836 = vmul.f32 %v824, 3.8918573e-05
        %v837 = vadd.f32 %v836, 0.001143296
        %v838 = vmul.f32 %v824, %v837
        %v839 = vadd.f32 %v838, 0.014752088
        %v840 = vmul.f32 %v824, %v839
        %v841 = vadd.f32 %v840, 0.112945676
        %v842 = vmul.f32 %v824, %v841
        %v843 = vadd.f32 %v842, 0.4994258
        %v844 = vmul.f32 %v824, %v843
        %v845 = vadd.f32 %v844, 1.0
        %v846 = vrcp.pop %v845
        %v847 = vmul.f32 %v845, %v846
        %v848 = vsub.f32 1.0, %v847
        %v849 = vmul.f32 %v846, %v848
        %v850 = vadd.f32 %v846, %v849
        %vm851 = vweird.f32 %v845
        %vm852 = vweird.f32 %v846
        %vm853 = vmor %vm851, %vm852
        %v854 = vsel %vm853, %v846, %v850
        %v855 = vand.u32 2147483647, %v845
        %vm856 = vcmp.eq.f32.partialorder %v855, 8.507059e+37
        %v857 = vand.u32 %v845, 2147483648
        %v858 = vor.u32 1.1754944e-38, %v857
        %v859 = vsel %vm856, %v858, %v854
        %v860 = vmul.f32 %v835, %v859
        %v861 = vmin.f32 %v860, 1.0
        %v862 = vmax.f32 %v861, -1.0
        %v863 = vmul.f32 %v816, %v816
        %v864 = vmin.f32 16.0, %v863
        %v865 = vmul.f32 %v864, 2.1237322e-06
        %v866 = vadd.f32 %v865, 0.00028619796
        %v867 = vmul.f32 %v864, %v866
        %v868 = vadd.f32 %v867, 0.0036580483
        %v869 = vmul.f32 %v864, %v868
        %v870 = vadd.f32 %v869, 0.05243302
        %v871 = vmul.f32 %v864, %v870
        %v872 = vadd.f32 %v871, 0.18741608
        %v873 = vmul.f32 %v864, %v872
        %v874 = vadd.f32 %v873, 1.1283791
        %v875 = vmul.f32 %v816, %v874
        %v876 = vmul.f32 %v864, 3.8918573e-05
        %v877 = vadd.f32 %v876, 0.001143296
        %v878 = vmul.f32 %v864, %v877
        %v879 = vadd.f32 %v878, 0.014752088
        %v880 = vmul.f32 %v864, %v879
        %v881 = vadd.f32 %v880, 0.112945676
        %v882 = vmul.f32 %v864, %v881
        %v883 = vadd.f32 %v882, 0.4994258
        %v884 = vmul.f32 %v864, %v883
        %v885 = vadd.f32 %v884, 1.0
        %v886 = vrcp.pop %v885
        %v887 = vmul.f32 %v885, %v886
        %v888 = vsub.f32 1.0, %v887
        %v889 = vmul.f32 %v886, %v888
        %v890 = vadd.f32 %v886, %v889
        %vm891 = vweird.f32 %v885
        %vm892 = vweird.f32 %v886
        %vm893 = vmor %vm891, %vm892
        %v894 = vsel %vm893, %v886, %v890
        %v895 = vand.u32 2147483647, %v885
        %vm896 = vcmp.eq.f32.partialorder %v895, 8.507059e+37
        %v897 = vand.u32 %v885, 2147483648
        %v898 = vor.u32 1.1754944e-38, %v897
        %v899 = vsel %vm896, %v898, %v894
        %v900 = vmul.f32 %v875, %v899
        %v901 = vmin.f32 %v900, 1.0
        %v902 = vmax.f32 %v901, -1.0
        %v903 = vmul.f32 %v817, %v817
        %v904 = vmin.f32 16.0, %v903
        %v905 = vmul.f32 %v904, 2.1237322e-06
        %v906 = vadd.f32 %v905, 0.00028619796
        %v907 = vmul.f32 %v904, %v906
        %v908 = vadd.f32 %v907, 0.0036580483
        %v909 = vmul.f32 %v904, %v908
        %v910 = vadd.f32 %v909, 0.05243302
        %v911 = vmul.f32 %v904, %v910
        %v912 = vadd.f32 %v911, 0.18741608
        %v913 = vmul.f32 %v904, %v912
        %v914 = vadd.f32 %v913, 1.1283791
        %v915 = vmul.f32 %v817, %v914
        %v916 = vmul.f32 %v904, 3.8918573e-05
        %v917 = vadd.f32 %v916, 0.001143296
        %v918 = vmul.f32 %v904, %v917
        %v919 = vadd.f32 %v918, 0.014752088
        %v920 = vmul.f32 %v904, %v919
        %v921 = vadd.f32 %v920, 0.112945676
        %v922 = vmul.f32 %v904, %v921
        %v923 = vadd.f32 %v922, 0.4994258
        %v924 = vmul.f32 %v904, %v923
        %v925 = vadd.f32 %v924, 1.0
        %v926 = vrcp.pop %v925
        %v927 = vmul.f32 %v925, %v926
        %v928 = vsub.f32 1.0, %v927
        %v929 = vmul.f32 %v926, %v928
        %v930 = vadd.f32 %v926, %v929
        %vm931 = vweird.f32 %v925
        %vm932 = vweird.f32 %v926
        %vm933 = vmor %vm931, %vm932
        %v934 = vsel %vm933, %v926, %v930
        %v935 = vand.u32 2147483647, %v925
        %vm936 = vcmp.eq.f32.partialorder %v935, 8.507059e+37
        %v937 = vand.u32 %v925, 2147483648
        %v938 = vor.u32 1.1754944e-38, %v937
        %v939 = vsel %vm936, %v938, %v934
        %v940 = vmul.f32 %v915, %v939
        %v941 = vmin.f32 %v940, 1.0
        %v942 = vmax.f32 %v941, -1.0
        %v943 = vmul.f32 %v818, %v818
        %v944 = vmin.f32 16.0, %v943
        %v945 = vmul.f32 %v944, 2.1237322e-06
        %v946 = vadd.f32 %v945, 0.00028619796
        %v947 = vmul.f32 %v944, %v946
        %v948 = vadd.f32 %v947, 0.0036580483
        %v949 = vmul.f32 %v944, %v948
        %v950 = vadd.f32 %v949, 0.05243302
        %v951 = vmul.f32 %v944, %v950
        %v952 = vadd.f32 %v951, 0.18741608
        %v953 = vmul.f32 %v944, %v952
        %v954 = vadd.f32 %v953, 1.1283791
        %v955 = vmul.f32 %v818, %v954
        %v956 = vmul.f32 %v944, 3.8918573e-05
        %v957 = vadd.f32 %v956, 0.001143296
        %v958 = vmul.f32 %v944, %v957
        %v959 = vadd.f32 %v958, 0.014752088
        %v960 = vmul.f32 %v944, %v959
        %v961 = vadd.f32 %v960, 0.112945676
        %v962 = vmul.f32 %v944, %v961
        %v963 = vadd.f32 %v962, 0.4994258
        %v964 = vmul.f32 %v944, %v963
        %v965 = vadd.f32 %v964, 1.0
        %v966 = vrcp.pop %v965
        %v967 = vmul.f32 %v965, %v966
        %v968 = vsub.f32 1.0, %v967
        %v969 = vmul.f32 %v966, %v968
        %v970 = vadd.f32 %v966, %v969
        %vm971 = vweird.f32 %v965
        %vm972 = vweird.f32 %v966
        %vm973 = vmor %vm971, %vm972
        %v974 = vsel %vm973, %v966, %v970
        %v975 = vand.u32 2147483647, %v965
        %vm976 = vcmp.eq.f32.partialorder %v975, 8.507059e+37
        %v977 = vand.u32 %v965, 2147483648
        %v978 = vor.u32 1.1754944e-38, %v977
        %v979 = vsel %vm976, %v978, %v974
        %v980 = vmul.f32 %v955, %v979
        %v981 = vmin.f32 %v980, 1.0
        %v982 = vmax.f32 %v981, -1.0
        %v983 = vmul.f32 %v819, %v819
        %v984 = vmin.f32 16.0, %v983
        %v985 = vmul.f32 %v984, 2.1237322e-06
        %v986 = vadd.f32 %v985, 0.00028619796
        %v987 = vmul.f32 %v984, %v986
        %v988 = vadd.f32 %v987, 0.0036580483
        %v989 = vmul.f32 %v984, %v988
        %v990 = vadd.f32 %v989, 0.05243302
        %v991 = vmul.f32 %v984, %v990
        %v992 = vadd.f32 %v991, 0.18741608
        %v993 = vmul.f32 %v984, %v992
        %v994 = vadd.f32 %v993, 1.1283791
        %v995 = vmul.f32 %v819, %v994
        %v996 = vmul.f32 %v984, 3.8918573e-05
        %v997 = vadd.f32 %v996, 0.001143296
        %v998 = vmul.f32 %v984, %v997
        %v999 = vadd.f32 %v998, 0.014752088
        %v1000 = vmul.f32 %v984, %v999
        %v1001 = vadd.f32 %v1000, 0.112945676
        %v1002 = vmul.f32 %v984, %v1001
        %v1003 = vadd.f32 %v1002, 0.4994258
        %v1004 = vmul.f32 %v984, %v1003
        %v1005 = vadd.f32 %v1004, 1.0
        %v1006 = vrcp.pop %v1005
        %v1007 = vmul.f32 %v1005, %v1006
        %v1008 = vsub.f32 1.0, %v1007
        %v1009 = vmul.f32 %v1006, %v1008
        %v1010 = vadd.f32 %v1006, %v1009
        %vm1011 = vweird.f32 %v1005
        %vm1012 = vweird.f32 %v1006
        %vm1013 = vmor %vm1011, %vm1012
        %v1014 = vsel %vm1013, %v1006, %v1010
        %v1015 = vand.u32 2147483647, %v1005
        %vm1016 = vcmp.eq.f32.partialorder %v1015, 8.507059e+37
        %v1017 = vand.u32 %v1005, 2147483648
        %v1018 = vor.u32 1.1754944e-38, %v1017
        %v1019 = vsel %vm1016, %v1018, %v1014
        %v1020 = vmul.f32 %v995, %v1019
        %v1021 = vmin.f32 %v1020, 1.0
        %v1022 = vmax.f32 %v1021, -1.0
        %v1023 = vmul.f32 %v820, %v820
        %v1024 = vmin.f32 16.0, %v1023
        %v1025 = vmul.f32 %v1024, 2.1237322e-06
        %v1026 = vadd.f32 %v1025, 0.00028619796
        %v1027 = vmul.f32 %v1024, %v1026
        %v1028 = vadd.f32 %v1027, 0.0036580483
        %v1029 = vmul.f32 %v1024, %v1028
        %v1030 = vadd.f32 %v1029, 0.05243302
        %v1031 = vmul.f32 %v1024, %v1030
        %v1032 = vadd.f32 %v1031, 0.18741608
        %v1033 = vmul.f32 %v1024, %v1032
        %v1034 = vadd.f32 %v1033, 1.1283791
        %v1035 = vmul.f32 %v820, %v1034
        %v1036 = vmul.f32 %v1024, 3.8918573e-05
        %v1037 = vadd.f32 %v1036, 0.001143296
        %v1038 = vmul.f32 %v1024, %v1037
        %v1039 = vadd.f32 %v1038, 0.014752088
        %v1040 = vmul.f32 %v1024, %v1039
        %v1041 = vadd.f32 %v1040, 0.112945676
        %v1042 = vmul.f32 %v1024, %v1041
        %v1043 = vadd.f32 %v1042, 0.4994258
        %v1044 = vmul.f32 %v1024, %v1043
        %v1045 = vadd.f32 %v1044, 1.0
        %v1046 = vrcp.pop %v1045
        %v1047 = vmul.f32 %v1045, %v1046
        %v1048 = vsub.f32 1.0, %v1047
        %v1049 = vmul.f32 %v1046, %v1048
        %v1050 = vadd.f32 %v1046, %v1049
        %vm1051 = vweird.f32 %v1045
        %vm1052 = vweird.f32 %v1046
        %vm1053 = vmor %vm1051, %vm1052
        %v1054 = vsel %vm1053, %v1046, %v1050
        %v1055 = vand.u32 2147483647, %v1045
        %vm1056 = vcmp.eq.f32.partialorder %v1055, 8.507059e+37
        %v1057 = vand.u32 %v1045, 2147483648
        %v1058 = vor.u32 1.1754944e-38, %v1057
        %v1059 = vsel %vm1056, %v1058, %v1054
        %v1060 = vmul.f32 %v1035, %v1059
        %v1061 = vmin.f32 %v1060, 1.0
        %v1062 = vmax.f32 %v1061, -1.0
        %v1063 = vmul.f32 %v821, %v821
        %v1064 = vmin.f32 16.0, %v1063
        %v1065 = vmul.f32 %v1064, 2.1237322e-06
        %v1066 = vadd.f32 %v1065, 0.00028619796
        %v1067 = vmul.f32 %v1064, %v1066
        %v1068 = vadd.f32 %v1067, 0.0036580483
        %v1069 = vmul.f32 %v1064, %v1068
        %v1070 = vadd.f32 %v1069, 0.05243302
        %v1071 = vmul.f32 %v1064, %v1070
        %v1072 = vadd.f32 %v1071, 0.18741608
        %v1073 = vmul.f32 %v1064, %v1072
        %v1074 = vadd.f32 %v1073, 1.1283791
        %v1075 = vmul.f32 %v821, %v1074
        %v1076 = vmul.f32 %v1064, 3.8918573e-05
        %v1077 = vadd.f32 %v1076, 0.001143296
        %v1078 = vmul.f32 %v1064, %v1077
        %v1079 = vadd.f32 %v1078, 0.014752088
        %v1080 = vmul.f32 %v1064, %v1079
        %v1081 = vadd.f32 %v1080, 0.112945676
        %v1082 = vmul.f32 %v1064, %v1081
        %v1083 = vadd.f32 %v1082, 0.4994258
        %v1084 = vmul.f32 %v1064, %v1083
        %v1085 = vadd.f32 %v1084, 1.0
        %v1086 = vrcp.pop %v1085
        %v1087 = vmul.f32 %v1085, %v1086
        %v1088 = vsub.f32 1.0, %v1087
        %v1089 = vmul.f32 %v1086, %v1088
        %v1090 = vadd.f32 %v1086, %v1089
        %vm1091 = vweird.f32 %v1085
        %vm1092 = vweird.f32 %v1086
        %vm1093 = vmor %vm1091, %vm1092
        %v1094 = vsel %vm1093, %v1086, %v1090
        %v1095 = vand.u32 2147483647, %v1085
        %vm1096 = vcmp.eq.f32.partialorder %v1095, 8.507059e+37
        %v1097 = vand.u32 %v1085, 2147483648
        %v1098 = vor.u32 1.1754944e-38, %v1097
        %v1099 = vsel %vm1096, %v1098, %v1094
        %v1100 = vmul.f32 %v1075, %v1099
        %v1101 = vmin.f32 %v1100, 1.0
        %v1102 = vmax.f32 %v1101, -1.0
        %v1103 = vmul.f32 %v822, %v822
        %v1104 = vmin.f32 16.0, %v1103
        %v1105 = vmul.f32 %v1104, 2.1237322e-06
        %v1106 = vadd.f32 %v1105, 0.00028619796
        %v1107 = vmul.f32 %v1104, %v1106
        %v1108 = vadd.f32 %v1107, 0.0036580483
        %v1109 = vmul.f32 %v1104, %v1108
        %v1110 = vadd.f32 %v1109, 0.05243302
        %v1111 = vmul.f32 %v1104, %v1110
        %v1112 = vadd.f32 %v1111, 0.18741608
        %v1113 = vmul.f32 %v1104, %v1112
        %v1114 = vadd.f32 %v1113, 1.1283791
        %v1115 = vmul.f32 %v822, %v1114
        %v1116 = vmul.f32 %v1104, 3.8918573e-05
        %v1117 = vadd.f32 %v1116, 0.001143296
        %v1118 = vmul.f32 %v1104, %v1117
        %v1119 = vadd.f32 %v1118, 0.014752088
        %v1120 = vmul.f32 %v1104, %v1119
        %v1121 = vadd.f32 %v1120, 0.112945676
        %v1122 = vmul.f32 %v1104, %v1121
        %v1123 = vadd.f32 %v1122, 0.4994258
        %v1124 = vmul.f32 %v1104, %v1123
        %v1125 = vadd.f32 %v1124, 1.0
        %v1126 = vrcp.pop %v1125
        %v1127 = vmul.f32 %v1125, %v1126
        %v1128 = vsub.f32 1.0, %v1127
        %v1129 = vmul.f32 %v1126, %v1128
        %v1130 = vadd.f32 %v1126, %v1129
        %vm1131 = vweird.f32 %v1125
        %vm1132 = vweird.f32 %v1126
        %vm1133 = vmor %vm1131, %vm1132
        %v1134 = vsel %vm1133, %v1126, %v1130
        %v1135 = vand.u32 2147483647, %v1125
        %vm1136 = vcmp.eq.f32.partialorder %v1135, 8.507059e+37
        %v1137 = vand.u32 %v1125, 2147483648
        %v1138 = vor.u32 1.1754944e-38, %v1137
        %v1139 = vsel %vm1136, %v1138, %v1134
        %v1140 = vmul.f32 %v1115, %v1139
        %v1141 = vmin.f32 %v1140, 1.0
        %v1142 = vmax.f32 %v1141, -1.0
        %v1143 = vadd.f32 %v862, 1.0
        %v1144 = vadd.f32 %v902, 1.0
        %v1145 = vadd.f32 %v942, 1.0
        %v1146 = vadd.f32 %v982, 1.0
        %v1147 = vadd.f32 %v1022, 1.0
        %v1148 = vadd.f32 %v1062, 1.0
        %v1149 = vadd.f32 %v1102, 1.0
        %v1150 = vadd.f32 %v1142, 1.0
        %v1151 = vmul.f32 %v807, %v1143
        %v1152 = vmul.f32 %v808, %v1144
        %v1153 = vmul.f32 %v809, %v1145
        %v1154 = vmul.f32 %v810, %v1146
        %v1155 = vmul.f32 %v811, %v1147
        %v1156 = vmul.f32 %v812, %v1148
        %v1157 = vmul.f32 %v813, %v1149
        %v1158 = vmul.f32 %v814, %v1150
        %v1159 = vld [vmem:[%s5] sm:$0xff]
        %v1160 = vld [vmem:[%s5 + $0x8] sm:$0xff]
        %v1161 = vld [vmem:[%s5 + $0x10] sm:$0xff]
        %v1162 = vld [vmem:[%s6] sm:$0x1]
        %v1164 = vperm.slane %v1162, 0
        %v1167 = vsel %vm741, %v1151, 0
        %v1170 = vsel %vm741, %v1152, 0
        %v1173 = vsel %vm741, %v1153, 0
        %v1176 = vsel %vm741, %v1154, 0
        %v1179 = vsel %vm741, %v1155, 0
        %v1182 = vsel %vm741, %v1156, 0
        %v1185 = vsel %vm741, %v1157, 0
        %v1188 = vsel %vm741, %v1158, 0
        %1190 = vmatpush.msra.mxu0 0.0
        %1191 = vmatpush.msra.mxu0 0.0
        %1192 = vmatpush.msra.mxu0 0.0
        %1193 = vmatpush.msra.mxu0 0.0
        %1194 = vmatpush.msra.mxu0 0.0
        %1195 = vmatpush.msra.mxu0 0.0
        %1196 = vmatpush.msra.mxu0 0.0
        %1197 = vmatpush.msra.mxu0 0.0
        %1198 = vmatpush.msra.mxu0 0.0
        %1199 = vmatpush.msra.mxu0 0.0
        %1200 = vmatpush.msra.mxu0 0.0
        %1201 = vmatpush.msra.mxu0 0.0
        %1202 = vmatpush.msra.mxu0 0.0
        %1203 = vmatpush.msra.mxu0 %v1161
        %1204 = vmatpush.msra.mxu0 %v1160
        %1205 = vmatpush.msra.mxu0 %v1159
        %1206 = vmatmul.f32.gmra.mxu0 %v1167
        %v1207 = vpop.f32.mrf.mxu0
        %v1208 = vadd.f32 %v1164, %v1207
        %1209 = vmatmul.f32.gmra.mxu0 %v1170
        %v1210 = vpop.f32.mrf.mxu0
        %v1211 = vadd.f32 %v1164, %v1210
        %1212 = vmatmul.f32.gmra.mxu0 %v1173
        %v1213 = vpop.f32.mrf.mxu0
        %v1214 = vadd.f32 %v1164, %v1213
        %1215 = vmatmul.f32.gmra.mxu0 %v1176
        %v1216 = vpop.f32.mrf.mxu0
        %v1217 = vadd.f32 %v1164, %v1216
        %1218 = vmatmul.f32.gmra.mxu0 %v1179
        %v1219 = vpop.f32.mrf.mxu0
        %v1220 = vadd.f32 %v1164, %v1219
        %1221 = vmatmul.f32.gmra.mxu0 %v1182
        %v1222 = vpop.f32.mrf.mxu0
        %v1223 = vadd.f32 %v1164, %v1222
        %1224 = vmatmul.f32.gmra.mxu0 %v1185
        %v1225 = vpop.f32.mrf.mxu0
        %v1226 = vadd.f32 %v1164, %v1225
        %1227 = vmatmul.f32.gmra.mxu0 %v1188
        %v1228 = vpop.f32.mrf.mxu0
        %v1229 = vadd.f32 %v1164, %v1228
        %1230 = vdwg.mxu0
        %vm1231 = vcmask 130048
        %1232 = vst.msk [vmem:[%s280] sm:$0xff] %vm1231, %v1208
        %1233 = vst.msk [vmem:[%s280 + $0x8] sm:$0xff] %vm1231, %v1211
        %1234 = vst.msk [vmem:[%s280 + $0x10] sm:$0xff] %vm1231, %v1214
        %1235 = vst.msk [vmem:[%s280 + $0x18] sm:$0xff] %vm1231, %v1217
        %1236 = vst.msk [vmem:[%s280 + $0x20] sm:$0xff] %vm1231, %v1220
        %1237 = vst.msk [vmem:[%s280 + $0x28] sm:$0xff] %vm1231, %v1223
        %1238 = vst.msk [vmem:[%s280 + $0x30] sm:$0xff] %vm1231, %v1226
        %1239 = vst.msk [vmem:[%s280 + $0x38] sm:$0xff] %vm1231, %v1229
        %s1240 = sand.u32 %s178, 1
        %s1241 = sand.u32 %s178, 1
        %s1242 = smul.addr %s1241, 64
        %s1243 = scalar_lea.vmem [#allocation2], %s1242
        // Predicated region
        $region49: #{_lambda_.1} parent=47 // pred_check
          %p1244 = pneg %p188
        $region50: #{_lambda_.1} parent=47 // pred_check_branch
          %1246 = sbr.rel (%p1244) target = $region52
        $region51: #{_lambda_.1} parent=47 // pred_region
          %s1247 = smul.u32 8, %s18
          %s1248 = ssub.s32 25, %s1247
          %p1249 = scmp.lt.s32.totalorder %s1248, 8
          %s1250 = scalar_select %p1249, %s1248, 8
          %s1251 = smul.u32 8, %s1250
          %p1252 = scmp.ne.s32.totalorder 0, %s1251
          %s1253 = smul.addr %s1247, 8
          %s1254 = scalar_lea.vmem %s7, %s1253
          // Predicated region
          $region53: #{_lambda_.1} parent=51 // pred_check
            %p1255 = pneg %p1252
          $region54: #{_lambda_.1} parent=51 // pred_check_branch
            %1257 = sbr.rel (%p1255) target = $region56
          $region55: #{_lambda_.1} parent=51 // pred_region
            // Predicated region
            $region57: #{_lambda_.1} parent=55 // pred_check
              _
            $region58: #{_lambda_.1} parent=55 // pred_check_branch
              %1259 = sbr.rel (0) target = $region60
            $region59: #{_lambda_.1} parent=55 // pred_region
              // Predicated region
              $region79: #{_lambda_.1} parent=59 // pred_check
                _
              $region80: #{_lambda_.1} parent=59 // pred_check_branch
                %1323 = sbr.rel (0) target = $region82
              $region81: #{_lambda_.1} parent=59 // pred_region
                %s1324 = sshrl.u32 %s1250, 3
                // While loop
                $region83: #{_lambda_.1} parent=81 // loop_pre_header
                  _
                $region84: #{_lambda_.1} parent=81 // loop_header
                  %s1326 = sphi 0, %s1328
                  %p1327 = scmp.ge.s32.totalorder %s1326, %s1324
                  %s1331 = sphi 0, %s1352
                  %s1332 = sphi %s1243, %s1355
                  %s1333 = sphi %s1254, %s1356
                $region85: #{_lambda_.1} parent=81 // loop_header_branch
                  %1330 = sbr.rel (%p1327) target = $region89
                $region86: #{_lambda_.1} parent=81 // loop_body
                  %v1334 = vld [vmem:[%s1332] sm:$0xff]
                  %1335 = vst [vmem:[%s1333] sm:$0xff] %v1334
                  %v1336 = vld [vmem:[%s1332 + $0x8] sm:$0xff]
                  %1337 = vst [vmem:[%s1333 + $0x8] sm:$0xff] %v1336
                  %v1338 = vld [vmem:[%s1332 + $0x10] sm:$0xff]
                  %1339 = vst [vmem:[%s1333 + $0x10] sm:$0xff] %v1338
                  %v1340 = vld [vmem:[%s1332 + $0x18] sm:$0xff]
                  %1341 = vst [vmem:[%s1333 + $0x18] sm:$0xff] %v1340
                  %v1342 = vld [vmem:[%s1332 + $0x20] sm:$0xff]
                  %1343 = vst [vmem:[%s1333 + $0x20] sm:$0xff] %v1342
                  %v1344 = vld [vmem:[%s1332 + $0x28] sm:$0xff]
                  %1345 = vst [vmem:[%s1333 + $0x28] sm:$0xff] %v1344
                  %v1346 = vld [vmem:[%s1332 + $0x30] sm:$0xff]
                  %1347 = vst [vmem:[%s1333 + $0x30] sm:$0xff] %v1346
                  %v1348 = vld [vmem:[%s1332 + $0x38] sm:$0xff]
                  %1349 = vst [vmem:[%s1333 + $0x38] sm:$0xff] %v1348
                  %s1350 = sadd.s32 1, %s1331
                  %p1351 = scmp.ge.s32.totalorder %s1350, %s1324
                  %s1352 = scalar_select %p1351, 0, %s1350
                  %s1353 = smul.u32 %s1352, 64
                  %s1354 = smul.u32 %s1352, 64
                  %s1355 = scalar_lea.vmem %s1243, %s1353 [#allocation2]
                  %s1356 = scalar_lea.vmem %s1254, %s1354
                $region87: #{_lambda_.1} parent=81 // loop_footer
                  %s1328 = sadd.s32 %s1326, 1
                $region88: #{_lambda_.1} parent=81 // loop_footer_branch
                  %1325 = sbr.rel target = $region84
                $region89: #{_lambda_.1} parent=81 // loop_exit
                  _
                %s1357 = sshrl.u32 %s1250, 3
                %s1358 = sand.u32 %s1250, 7
                %s1359 = smul.u32 %s1357, 8
                %s1360 = smul.u32 8, %s1359
                %s1361 = scalar_lea.vmem %s1243, %s1360 [#allocation2]
                %s1362 = smul.u32 8, %s1359
                %s1363 = scalar_lea.vmem %s1254, %s1362
                // While loop
                $region90: #{_lambda_.1} parent=81 // loop_pre_header
                  _
                $region91: #{_lambda_.1} parent=81 // loop_header
                  %s1365 = sphi 0, %s1367
                  %p1366 = scmp.ge.s32.totalorder %s1365, %s1358
                  %s1370 = sphi 0, %s1377
                  %s1371 = sphi %s1361, %s1380
                  %s1372 = sphi %s1363, %s1381
                $region92: #{_lambda_.1} parent=81 // loop_header_branch
                  %1369 = sbr.rel (%p1366) target = $region96
                $region93: #{_lambda_.1} parent=81 // loop_body
                  %v1373 = vld [vmem:[%s1371] sm:$0xff]
                  %1374 = vst [vmem:[%s1372] sm:$0xff] %v1373
                  %s1375 = sadd.s32 1, %s1370
                  %p1376 = scmp.ge.s32.totalorder %s1375, %s1358
                  %s1377 = scalar_select %p1376, 0, %s1375
                  %s1378 = smul.u32 %s1377, 8
                  %s1379 = smul.u32 %s1377, 8
                  %s1380 = scalar_lea.vmem %s1361, %s1378 [#allocation2]
                  %s1381 = scalar_lea.vmem %s1363, %s1379
                $region94: #{_lambda_.1} parent=81 // loop_footer
                  %s1367 = sadd.s32 %s1365, 1
                $region95: #{_lambda_.1} parent=81 // loop_footer_branch
                  %1364 = sbr.rel target = $region91
                $region96: #{_lambda_.1} parent=81 // loop_exit
                  _
              $region82: #{_lambda_.1} parent=59 // pred_fallthru
                _
              // Predicated region
              $region97: #{_lambda_.1} parent=59 // pred_check
                _
              $region98: #{_lambda_.1} parent=59 // pred_check_branch
                %1383 = sbr.rel target = $region100
              $region99: #{_lambda_.1} parent=59 // pred_region
                _
              $region100: #{_lambda_.1} parent=59 // pred_fallthru
                _
            $region60: #{_lambda_.1} parent=55 // pred_fallthru
              _
            // Predicated region
            $region61: #{_lambda_.1} parent=55 // pred_check
              _
            $region62: #{_lambda_.1} parent=55 // pred_check_branch
              %1261 = sbr.rel target = $region64
            $region63: #{_lambda_.1} parent=55 // pred_region
              %s1263 = ssub.s32 256, 1
              %s1264 = sshrl.u32 %s1250, 3
              // While loop
              $region65: #{_lambda_.1} parent=63 // loop_pre_header
                _
              $region66: #{_lambda_.1} parent=63 // loop_header
                %s1266 = sphi 0, %s1268
                %p1267 = scmp.ge.s32.totalorder %s1266, %s1264
                %s1271 = sphi 0, %s1292
                %s1272 = sphi %s1243, %s1295
                %s1273 = sphi %s1254, %s1296
              $region67: #{_lambda_.1} parent=63 // loop_header_branch
                %1270 = sbr.rel (%p1267) target = $region71
              $region68: #{_lambda_.1} parent=63 // loop_body
                %v1274 = vld [vmem:[%s1272] sm:%s1263]
                %1275 = vst [vmem:[%s1273] sm:%s1263] %v1274
                %v1276 = vld [vmem:[%s1272 + $0x8] sm:%s1263]
                %1277 = vst [vmem:[%s1273 + $0x8] sm:%s1263] %v1276
                %v1278 = vld [vmem:[%s1272 + $0x10] sm:%s1263]
                %1279 = vst [vmem:[%s1273 + $0x10] sm:%s1263] %v1278
                %v1280 = vld [vmem:[%s1272 + $0x18] sm:%s1263]
                %1281 = vst [vmem:[%s1273 + $0x18] sm:%s1263] %v1280
                %v1282 = vld [vmem:[%s1272 + $0x20] sm:%s1263]
                %1283 = vst [vmem:[%s1273 + $0x20] sm:%s1263] %v1282
                %v1284 = vld [vmem:[%s1272 + $0x28] sm:%s1263]
                %1285 = vst [vmem:[%s1273 + $0x28] sm:%s1263] %v1284
                %v1286 = vld [vmem:[%s1272 + $0x30] sm:%s1263]
                %1287 = vst [vmem:[%s1273 + $0x30] sm:%s1263] %v1286
                %v1288 = vld [vmem:[%s1272 + $0x38] sm:%s1263]
                %1289 = vst [vmem:[%s1273 + $0x38] sm:%s1263] %v1288
                %s1290 = sadd.s32 1, %s1271
                %p1291 = scmp.ge.s32.totalorder %s1290, %s1264
                %s1292 = scalar_select %p1291, 0, %s1290
                %s1293 = smul.u32 %s1292, 64
                %s1294 = smul.u32 %s1292, 64
                %s1295 = scalar_lea.vmem %s1243, %s1293 [#allocation2]
                %s1296 = scalar_lea.vmem %s1254, %s1294
              $region69: #{_lambda_.1} parent=63 // loop_footer
                %s1268 = sadd.s32 %s1266, 1
              $region70: #{_lambda_.1} parent=63 // loop_footer_branch
                %1265 = sbr.rel target = $region66
              $region71: #{_lambda_.1} parent=63 // loop_exit
                _
              %s1297 = sshrl.u32 %s1250, 3
              %s1298 = sand.u32 %s1250, 7
              %s1299 = smul.u32 %s1297, 8
              %s1300 = smul.u32 8, %s1299
              %s1301 = scalar_lea.vmem %s1243, %s1300 [#allocation2]
              %s1302 = smul.u32 8, %s1299
              %s1303 = scalar_lea.vmem %s1254, %s1302
              // While loop
              $region72: #{_lambda_.1} parent=63 // loop_pre_header
                _
              $region73: #{_lambda_.1} parent=63 // loop_header
                %s1305 = sphi 0, %s1307
                %p1306 = scmp.ge.s32.totalorder %s1305, %s1298
                %s1310 = sphi 0, %s1317
                %s1311 = sphi %s1301, %s1320
                %s1312 = sphi %s1303, %s1321
              $region74: #{_lambda_.1} parent=63 // loop_header_branch
                %1309 = sbr.rel (%p1306) target = $region78
              $region75: #{_lambda_.1} parent=63 // loop_body
                %v1313 = vld [vmem:[%s1311] sm:%s1263]
                %1314 = vst [vmem:[%s1312] sm:%s1263] %v1313
                %s1315 = sadd.s32 1, %s1310
                %p1316 = scmp.ge.s32.totalorder %s1315, %s1298
                %s1317 = scalar_select %p1316, 0, %s1315
                %s1318 = smul.u32 %s1317, 8
                %s1319 = smul.u32 %s1317, 8
                %s1320 = scalar_lea.vmem %s1301, %s1318 [#allocation2]
                %s1321 = scalar_lea.vmem %s1303, %s1319
              $region76: #{_lambda_.1} parent=63 // loop_footer
                %s1307 = sadd.s32 %s1305, 1
              $region77: #{_lambda_.1} parent=63 // loop_footer_branch
                %1304 = sbr.rel target = $region73
              $region78: #{_lambda_.1} parent=63 // loop_exit
                _
            $region64: #{_lambda_.1} parent=55 // pred_fallthru
              _
          $region56: #{_lambda_.1} parent=51 // pred_fallthru
            _
          %1384 = vnop
        $region52: #{_lambda_.1} parent=47 // pred_fallthru
          _
      $region48: #{_lambda_.1} parent=5 // pred_fallthru
        _
      %p1385 = scmp.le.s32.totalorder 2, %s13
      // Predicated region
      $region101: #{_lambda_.1} parent=5 // pred_check
        %p1386 = pneg %p1385
      $region102: #{_lambda_.1} parent=5 // pred_check_branch
        %1388 = sbr.rel (%p1386) target = $region104
      $region103: #{_lambda_.1} parent=5 // pred_region
        %s1389 = ssub.s32 %s13, 2
        // Predicated region
        $region105: #{_lambda_.1} parent=103 // pred_check
          %p1390 = pneg %p194
        $region106: #{_lambda_.1} parent=103 // pred_check_branch
          %1392 = sbr.rel (%p1390) target = $region108
        $region107: #{_lambda_.1} parent=103 // pred_region
          %s1393 = sand.u32 %s179, 1
          %s1394 = sand.u32 %s179, 1
          %s1395 = smul.addr %s1394, 64
          %s1396 = scalar_lea.vmem [#allocation2], %s1395
        $region108: #{_lambda_.1} parent=103 // pred_fallthru
          _
      $region104: #{_lambda_.1} parent=5 // pred_fallthru
        _
    $region6: #{_lambda_.1} parent=1 // loop_footer
      %s17 = sadd.s32 1, %s13
    $region7: #{_lambda_.1} parent=1 // loop_footer_branch
      %12 = sbr.rel target = $region3
    $region8: #{_lambda_.1} parent=1 // loop_exit
      _

</llo_original>
